<compile_context>
chip_gen: v7x
topology: tpu7x:2x2x1
jax: 0.10.0
libtpu: 0.0.40
codegen_flags: <defaults>
</compile_context>

<pallas_src>
import jax
import jax.numpy as jnp
from jax.experimental import pallas as pl
from jax.experimental.pallas import tpu as pltpu

NEG_INF = -1e21


# ----------------------------------------------------------------------------- kernel
def avrg_net_kernel(obs_ref, idx_ref,
                    w1o_ref, w1e_ref, b1_ref,
                    w2_ref, b2_ref,
                    wf_ref, bf_ref,
                    wo_ref, bo_ref,
                    out_ref):
    # f32 HBM stream -> bf16 MXU operand (cast on the VPU, hidden under the HBM/MXU work)
    obs = obs_ref[...].astype(jnp.bfloat16)              # bf16 [TB, OBS]
    idx = idx_ref[...]                                    # i32  [TB, 1]
    tb = obs.shape[0]
    n_ranges = w1e_ref.shape[0]

    # one-hot range embedding built on the fly (no HBM concat / one-hot materialization)
    lane_ids = jax.lax.broadcasted_iota(jnp.int32, (tb, n_ranges), 1)
    one_hot = (lane_ids == idx).astype(jnp.bfloat16)      # bf16 [TB, R]

    # layer 1: obs part + range-embedding part (== concat(obs, one_hot) @ W1)
    h = (jnp.dot(obs, w1o_ref[...], preferred_element_type=jnp.float32)
         + jnp.dot(one_hot, w1e_ref[...], preferred_element_type=jnp.float32)
         + b1_ref[...])
    h = jnp.maximum(h, 0.0)

    # MPM layer 2
    h = jnp.dot(h.astype(jnp.bfloat16), w2_ref[...],
                preferred_element_type=jnp.float32) + b2_ref[...]
    h = jnp.maximum(h, 0.0)

    # final layer + ReLU
    h = jnp.dot(h.astype(jnp.bfloat16), wf_ref[...],
                preferred_element_type=jnp.float32) + bf_ref[...]
    h = jnp.maximum(h, 0.0)

    # output layer (logits, no softmax); padded action columns carry zero weights/bias
    logits = jnp.dot(h.astype(jnp.bfloat16), wo_ref[...],
                     preferred_element_type=jnp.float32) + bo_ref[...]   # f32 [TB, AP]

    # Transposed, lane-dense store: [AOUT, TB] with batch along lanes.  The full aligned
    # [TB, AP] -> [AP, TB] transpose runs on the XLU (its own issue slot), then only the
    # first AOUT sublane rows (real actions, padded to 8) are written to HBM.
    aout = out_ref.shape[0]
    out_ref[...] = jnp.transpose(logits)[:aout, :]


# ----------------------------------------------------------------------------- helpers
def _rup(n, m):
    return ((n + m - 1) // m) * m


def _pad_axis(a, axis, target):
    pad = target - a.shape[axis]
    if pad <= 0:
        return a
    widths = [(0, 0)] * a.ndim
    widths[axis] = (0, pad)
    return jnp.pad(a, widths)


# ----------------------------------------------------------------------------- wrapper
def avrg_strategy_net_forward(pub_obses, range_idxs, legal_action_masks, params,
                              n_ranges, *, batch_tile=1024):
    """pub_obses: f32[B, OBS], range_idxs: i32[B], legal_action_masks: f32[B, A]."""
    B, OBS = pub_obses.shape
    A = legal_action_masks.shape[1]
    assert params["w1"].shape[0] == OBS + n_ranges

    # ---- lane-dense zero-padding of the net widths (weights only; exact no-ops) ----
    H1 = _rup(params["w1"].shape[1], 128)
    H2 = _rup(params["w2"].shape[1], 128)
    HF = _rup(params["wf"].shape[1], 128)
    AP = _rup(A, 128)    # matmul N padding of the last layer (weight-side only)
    AOUT = _rup(A, 8)    # sublane-padded action rows actually written to HBM

    w1 = _pad_axis(params["w1"], 1, H1).astype(jnp.bfloat16)          # [OBS+R, H1]
    w1_obs = w1[:OBS]                                                  # [OBS, H1]
    w1_emb = w1[OBS:OBS + n_ranges]                                    # [R,   H1]
    b1 = _pad_axis(params["b1"], 1, H1).astype(jnp.float32)

    w2 = _pad_axis(_pad_axis(params["w2"], 0, H1), 1, H2).astype(jnp.bfloat16)
    b2 = _pad_axis(params["b2"], 1, H2).astype(jnp.float32)
    wf = _pad_axis(_pad_axis(params["wf"], 0, H2), 1, HF).astype(jnp.bfloat16)
    bf = _pad_axis(params["bf"], 1, HF).astype(jnp.float32)
    wo = _pad_axis(_pad_axis(params["wo"], 0, HF), 1, AP).astype(jnp.bfloat16)
    bo = _pad_axis(params["bo"], 1, AP).astype(jnp.float32)

    # ---- batch tiling: TB multiple of 128 (lane-dense transposed output) ----
    TB = min(_rup(batch_tile, 128), _rup(B, 128))
    Bp = _rup(B, TB)

    obs = _pad_axis(pub_obses, 0, Bp)                                  # f32, no cast pass
    idx = _pad_axis(range_idxs.reshape(-1, 1).astype(jnp.int32), 0, Bp)

    grid = (Bp // TB,)
    row = lambda i: (i, 0)     # batch-tiled inputs
    col = lambda i: (0, i)     # transposed, batch-tiled output
    rep = lambda i: (0, 0)     # VMEM-resident weights / biases

    out_t = pl.pallas_call(
        avrg_net_kernel,
        out_shape=jax.ShapeDtypeStruct((AOUT, Bp), jnp.float32),
        grid=grid,
        in_specs=[
            pl.BlockSpec((TB, OBS), row),
            pl.BlockSpec((TB, 1), row),
            pl.BlockSpec(w1_obs.shape, rep),
            pl.BlockSpec(w1_emb.shape, rep),
            pl.BlockSpec(b1.shape, rep),
            pl.BlockSpec(w2.shape, rep),
            pl.BlockSpec(b2.shape, rep),
            pl.BlockSpec(wf.shape, rep),
            pl.BlockSpec(bf.shape, rep),
            pl.BlockSpec(wo.shape, rep),
            pl.BlockSpec(bo.shape, rep),
        ],
        out_specs=pl.BlockSpec((AOUT, TB), col),
        compiler_params=pltpu.CompilerParams(
            dimension_semantics=("parallel",),
            vmem_limit_bytes=32 << 20,
        ),
    )(obs, idx, w1_obs, w1_emb, b1, w2, b2, wf, bf, wo, bo)

    # Tiny XLA epilogue on [A, B]: slice padding away, restore [B, A] layout, and apply
    # the legal-action mask with the exact reference `== 1.0` semantics.
    logits = out_t[:A, :B].T
    return jnp.where(legal_action_masks == 1.0, logits,
                     jnp.float32(NEG_INF))


forward_jit = jax.jit(avrg_strategy_net_forward,
                      static_argnames=("n_ranges", "batch_tile"))


# ----------------------------------------------------------------------------- params
def init_params(key, d_in, h_mpm, mpm_out, n_units_final, n_actions):
    ks = jax.random.split(key, 8)

    def lin(kw, kb, fan_in, fan_out):
        lim = 1.0 / jnp.sqrt(fan_in)
        w = jax.random.uniform(kw, (fan_in, fan_out), jnp.float32, -lim, lim)
        b = jax.random.uniform(kb, (1, fan_out), jnp.float32, -lim, lim)
        return w, b

    w1, b1 = lin(ks[0], ks[1], d_in, h_mpm)
    w2, b2 = lin(ks[2], ks[3], h_mpm, mpm_out)
    wf, bf = lin(ks[4], ks[5], mpm_out, n_units_final)
    wo, bo = lin(ks[6], ks[7], n_units_final, n_actions)
    return dict(w1=w1, b1=b1, w2=w2, b2=b2, wf=wf, bf=bf, wo=wo, bo=bo)


# ----------------------------------------------------------------------------- reference
def reference_forward(pub_obses, range_idxs, legal_action_masks, params, n_ranges):
    range_oh = jax.nn.one_hot(range_idxs, n_ranges, dtype=jnp.float32)
    x = jnp.concatenate([pub_obses, range_oh], axis=-1)
    h = jax.nn.relu(x @ params["w1"] + params["b1"])
    h = jax.nn.relu(h @ params["w2"] + params["b2"])
    h = jax.nn.relu(h @ params["wf"] + params["bf"])
    logits = h @ params["wo"] + params["bo"]
    return jnp.where(legal_action_masks == 1.0, logits,
                     jnp.full_like(logits, NEG_INF))


# ----------------------------------------------------------------------------- main
if __name__ == "__main__":
    # Small, module-consistent synthetic shapes
    B = 8                 # batch
    OBS = 24              # public-observation feature dim
    N_RANGES = 16         # range-index vocabulary (one-hot embedding size)
    H_MPM = 64            # MPM hidden units
    MPM_OUT = 64          # MPM.output_units
    N_UNITS_FINAL = 64    # avrg_net_args.n_units_final
    N_ACTIONS = 6         # env_bldr.N_ACTIONS

    key = jax.random.PRNGKey(0)
    k_obs, k_rng, k_mask, k_param = jax.random.split(key, 4)

    pub_obses = jax.random.normal(k_obs, (B, OBS), dtype=jnp.float32)
    range_idxs = jax.random.randint(k_rng, (B,), 0, N_RANGES, dtype=jnp.int32)
    legal_action_masks = (jax.random.uniform(k_mask, (B, N_ACTIONS)) > 0.3).astype(jnp.float32)

    params = init_params(k_param, OBS + N_RANGES, H_MPM, MPM_OUT, N_UNITS_FINAL, N_ACTIONS)

    out = forward_jit(pub_obses, range_idxs, legal_action_masks, params,
                      n_ranges=N_RANGES)
    out = jax.block_until_ready(out)

    ref = reference_forward(pub_obses, range_idxs, legal_action_masks, params, N_RANGES)
    assert out.shape == (B, N_ACTIONS)
    # bf16 MXU inputs (f32 accumulation) vs a pure-f32 reference -> loose tolerance
    assert jnp.allclose(out, ref, rtol=5e-2, atol=5e-2), "mismatch vs JAX reference"

    print("KERNEL_OK")
</pallas_src>

<mosaic_0001>
module attributes {stable_mosaic.version = 11 : i64} {
  func.func @avrg_net_kernel(%arg0: i32, %arg1: memref<128x24xf32, #tpu.memory_space<vmem>>, %arg2: memref<128x1xi32, #tpu.memory_space<vmem>>, %arg3: memref<24x128xbf16, #tpu.memory_space<vmem>>, %arg4: memref<16x128xbf16, #tpu.memory_space<vmem>>, %arg5: memref<1x128xf32, #tpu.memory_space<vmem>>, %arg6: memref<128x128xbf16, #tpu.memory_space<vmem>>, %arg7: memref<1x128xf32, #tpu.memory_space<vmem>>, %arg8: memref<128x128xbf16, #tpu.memory_space<vmem>>, %arg9: memref<1x128xf32, #tpu.memory_space<vmem>>, %arg10: memref<128x128xbf16, #tpu.memory_space<vmem>>, %arg11: memref<1x128xf32, #tpu.memory_space<vmem>>, %arg12: memref<8x128xf32, #tpu.memory_space<vmem>>) attributes {dimension_semantics = [#tpu.dimension_semantics<parallel>], iteration_bounds = array<i64: 1>, scalar_prefetch = 0 : i64, scratch_operands = 0 : i64, tpu.core_type = #tpu.core_type<tc>, window_params = [{transform_indices = @transform_0, window_bounds = array<i64: 128, 24>}, {transform_indices = @transform_1, window_bounds = array<i64: 128, 1>}, {pipeline_mode = #tpu.pipeline_mode<synchronous>, transform_indices = @transform_2, window_bounds = array<i64: 24, 128>}, {pipeline_mode = #tpu.pipeline_mode<synchronous>, transform_indices = @transform_3, window_bounds = array<i64: 16, 128>}, {pipeline_mode = #tpu.pipeline_mode<synchronous>, transform_indices = @transform_4, window_bounds = array<i64: 1, 128>}, {pipeline_mode = #tpu.pipeline_mode<synchronous>, transform_indices = @transform_5, window_bounds = array<i64: 128, 128>}, {pipeline_mode = #tpu.pipeline_mode<synchronous>, transform_indices = @transform_6, window_bounds = array<i64: 1, 128>}, {pipeline_mode = #tpu.pipeline_mode<synchronous>, transform_indices = @transform_7, window_bounds = array<i64: 128, 128>}, {pipeline_mode = #tpu.pipeline_mode<synchronous>, transform_indices = @transform_8, window_bounds = array<i64: 1, 128>}, {pipeline_mode = #tpu.pipeline_mode<synchronous>, transform_indices = @transform_9, window_bounds = array<i64: 128, 128>}, {pipeline_mode = #tpu.pipeline_mode<synchronous>, transform_indices = @transform_10, window_bounds = array<i64: 1, 128>}, {transform_indices = @transform_11, window_bounds = array<i64: 8, 128>}]} {
    %c0 = arith.constant 0 : index
    %c0_0 = arith.constant 0 : index
    %0 = vector.load %arg1[%c0, %c0_0] : memref<128x24xf32, #tpu.memory_space<vmem>>, vector<128x24xf32>
    %1 = arith.truncf %0 : vector<128x24xf32> to vector<128x24xbf16>
    %c0_1 = arith.constant 0 : index
    %c0_2 = arith.constant 0 : index
    %2 = vector.load %arg2[%c0_1, %c0_2] : memref<128x1xi32, #tpu.memory_space<vmem>>, vector<128x1xi32>
    %3 = tpu.iota {dimensions = array<i32: 1>} : vector<128x16xi32>
    %4 = vector.broadcast %2 : vector<128x1xi32> to vector<128x16xi32>
    %5 = arith.cmpi eq, %3, %4 : vector<128x16xi32>
    %6 = arith.extui %5 : vector<128x16xi1> to vector<128x16xi32>
    %7 = arith.sitofp %6 : vector<128x16xi32> to vector<128x16xf32>
    %8 = arith.truncf %7 : vector<128x16xf32> to vector<128x16xbf16>
    %c0_3 = arith.constant 0 : index
    %c0_4 = arith.constant 0 : index
    %9 = vector.load %arg3[%c0_3, %c0_4] : memref<24x128xbf16, #tpu.memory_space<vmem>>, vector<24x128xbf16>
    %cst = arith.constant dense<0.000000e+00> : vector<128x128xf32>
    %10 = tpu.matmul %1, %9, %cst {dimension_numbers = #tpu.dot_dimension_numbers<[1], [0], [0], [1], [0, 0, 1, 1], [], []>} : vector<128x24xbf16>, vector<24x128xbf16>, vector<128x128xf32> -> vector<128x128xf32>
    %c0_5 = arith.constant 0 : index
    %c0_6 = arith.constant 0 : index
    %11 = vector.load %arg4[%c0_5, %c0_6] : memref<16x128xbf16, #tpu.memory_space<vmem>>, vector<16x128xbf16>
    %cst_7 = arith.constant dense<0.000000e+00> : vector<128x128xf32>
    %12 = tpu.matmul %8, %11, %cst_7 {dimension_numbers = #tpu.dot_dimension_numbers<[1], [0], [0], [1], [0, 0, 1, 1], [], []>} : vector<128x16xbf16>, vector<16x128xbf16>, vector<128x128xf32> -> vector<128x128xf32>
    %13 = arith.addf %10, %12 : vector<128x128xf32>
    %c0_8 = arith.constant 0 : index
    %c0_9 = arith.constant 0 : index
    %14 = vector.load %arg5[%c0_8, %c0_9] : memref<1x128xf32, #tpu.memory_space<vmem>>, vector<1x128xf32>
    %15 = vector.broadcast %14 : vector<1x128xf32> to vector<128x128xf32>
    %16 = arith.addf %13, %15 : vector<128x128xf32>
    %cst_10 = arith.constant 0.000000e+00 : f32
    %17 = vector.broadcast %cst_10 : f32 to vector<128x128xf32>
    %18 = arith.maximumf %16, %17 : vector<128x128xf32>
    %19 = arith.truncf %18 : vector<128x128xf32> to vector<128x128xbf16>
    %c0_11 = arith.constant 0 : index
    %c0_12 = arith.constant 0 : index
    %20 = vector.load %arg6[%c0_11, %c0_12] : memref<128x128xbf16, #tpu.memory_space<vmem>>, vector<128x128xbf16>
    %cst_13 = arith.constant dense<0.000000e+00> : vector<128x128xf32>
    %21 = tpu.matmul %19, %20, %cst_13 {dimension_numbers = #tpu.dot_dimension_numbers<[1], [0], [0], [1], [0, 0, 1, 1], [], []>} : vector<128x128xbf16>, vector<128x128xbf16>, vector<128x128xf32> -> vector<128x128xf32>
    %c0_14 = arith.constant 0 : index
    %c0_15 = arith.constant 0 : index
    %22 = vector.load %arg7[%c0_14, %c0_15] : memref<1x128xf32, #tpu.memory_space<vmem>>, vector<1x128xf32>
    %23 = vector.broadcast %22 : vector<1x128xf32> to vector<128x128xf32>
    %24 = arith.addf %21, %23 : vector<128x128xf32>
    %cst_16 = arith.constant 0.000000e+00 : f32
    %25 = vector.broadcast %cst_16 : f32 to vector<128x128xf32>
    %26 = arith.maximumf %24, %25 : vector<128x128xf32>
    %27 = arith.truncf %26 : vector<128x128xf32> to vector<128x128xbf16>
    %c0_17 = arith.constant 0 : index
    %c0_18 = arith.constant 0 : index
    %28 = vector.load %arg8[%c0_17, %c0_18] : memref<128x128xbf16, #tpu.memory_space<vmem>>, vector<128x128xbf16>
    %cst_19 = arith.constant dense<0.000000e+00> : vector<128x128xf32>
    %29 = tpu.matmul %27, %28, %cst_19 {dimension_numbers = #tpu.dot_dimension_numbers<[1], [0], [0], [1], [0, 0, 1, 1], [], []>} : vector<128x128xbf16>, vector<128x128xbf16>, vector<128x128xf32> -> vector<128x128xf32>
    %c0_20 = arith.constant 0 : index
    %c0_21 = arith.constant 0 : index
    %30 = vector.load %arg9[%c0_20, %c0_21] : memref<1x128xf32, #tpu.memory_space<vmem>>, vector<1x128xf32>
    %31 = vector.broadcast %30 : vector<1x128xf32> to vector<128x128xf32>
    %32 = arith.addf %29, %31 : vector<128x128xf32>
    %cst_22 = arith.constant 0.000000e+00 : f32
    %33 = vector.broadcast %cst_22 : f32 to vector<128x128xf32>
    %34 = arith.maximumf %32, %33 : vector<128x128xf32>
    %35 = arith.truncf %34 : vector<128x128xf32> to vector<128x128xbf16>
    %c0_23 = arith.constant 0 : index
    %c0_24 = arith.constant 0 : index
    %36 = vector.load %arg10[%c0_23, %c0_24] : memref<128x128xbf16, #tpu.memory_space<vmem>>, vector<128x128xbf16>
    %cst_25 = arith.constant dense<0.000000e+00> : vector<128x128xf32>
    %37 = tpu.matmul %35, %36, %cst_25 {dimension_numbers = #tpu.dot_dimension_numbers<[1], [0], [0], [1], [0, 0, 1, 1], [], []>} : vector<128x128xbf16>, vector<128x128xbf16>, vector<128x128xf32> -> vector<128x128xf32>
    %c0_26 = arith.constant 0 : index
    %c0_27 = arith.constant 0 : index
    %38 = vector.load %arg11[%c0_26, %c0_27] : memref<1x128xf32, #tpu.memory_space<vmem>>, vector<1x128xf32>
    %39 = vector.broadcast %38 : vector<1x128xf32> to vector<128x128xf32>
    %40 = arith.addf %37, %39 : vector<128x128xf32>
    %41 = tpu.transpose %40, [1, 0] : vector<128x128xf32> -> vector<128x128xf32>
    %42 = vector.extract_strided_slice %41 {offsets = [0, 0], sizes = [8, 128], strides = [1, 1]} : vector<128x128xf32> to vector<8x128xf32>
    %c0_28 = arith.constant 0 : index
    %c0_29 = arith.constant 0 : index
    %43 = vector.load %arg12[%c0_28, %c0_29] : memref<8x128xf32, #tpu.memory_space<vmem>>, vector<8x128xf32>
    tpu.vector_store %arg12[%c0_28, %c0_29], %42 {strides = array<i32>} : memref<8x128xf32, #tpu.memory_space<vmem>>, vector<8x128xf32>,
    return
  }
  func.func @transform_0(%arg0: i32) -> (i32, i32) {
    %c0_i32 = arith.constant 0 : i32
    %c0_i32_0 = arith.constant 0 : i32
    return %arg0, %c0_i32 : i32, i32
  }
  func.func @transform_1(%arg0: i32) -> (i32, i32) {
    %c0_i32 = arith.constant 0 : i32
    %c0_i32_0 = arith.constant 0 : i32
    return %arg0, %c0_i32 : i32, i32
  }
  func.func @transform_2(%arg0: i32) -> (i32, i32) {
    %c0_i32 = arith.constant 0 : i32
    %c0_i32_0 = arith.constant 0 : i32
    %c0_i32_1 = arith.constant 0 : i32
    return %c0_i32, %c0_i32_0 : i32, i32
  }
  func.func @transform_3(%arg0: i32) -> (i32, i32) {
    %c0_i32 = arith.constant 0 : i32
    %c0_i32_0 = arith.constant 0 : i32
    %c0_i32_1 = arith.constant 0 : i32
    return %c0_i32, %c0_i32_0 : i32, i32
  }
  func.func @transform_4(%arg0: i32) -> (i32, i32) {
    %c0_i32 = arith.constant 0 : i32
    %c0_i32_0 = arith.constant 0 : i32
    %c0_i32_1 = arith.constant 0 : i32
    return %c0_i32, %c0_i32_0 : i32, i32
  }
  func.func @transform_5(%arg0: i32) -> (i32, i32) {
    %c0_i32 = arith.constant 0 : i32
    %c0_i32_0 = arith.constant 0 : i32
    %c0_i32_1 = arith.constant 0 : i32
    return %c0_i32, %c0_i32_0 : i32, i32
  }
  func.func @transform_6(%arg0: i32) -> (i32, i32) {
    %c0_i32 = arith.constant 0 : i32
    %c0_i32_0 = arith.constant 0 : i32
    %c0_i32_1 = arith.constant 0 : i32
    return %c0_i32, %c0_i32_0 : i32, i32
  }
  func.func @transform_7(%arg0: i32) -> (i32, i32) {
    %c0_i32 = arith.constant 0 : i32
    %c0_i32_0 = arith.constant 0 : i32
    %c0_i32_1 = arith.constant 0 : i32
    return %c0_i32, %c0_i32_0 : i32, i32
  }
  func.func @transform_8(%arg0: i32) -> (i32, i32) {
    %c0_i32 = arith.constant 0 : i32
    %c0_i32_0 = arith.constant 0 : i32
    %c0_i32_1 = arith.constant 0 : i32
    return %c0_i32, %c0_i32_0 : i32, i32
  }
  func.func @transform_9(%arg0: i32) -> (i32, i32) {
    %c0_i32 = arith.constant 0 : i32
    %c0_i32_0 = arith.constant 0 : i32
    %c0_i32_1 = arith.constant 0 : i32
    return %c0_i32, %c0_i32_0 : i32, i32
  }
  func.func @transform_10(%arg0: i32) -> (i32, i32) {
    %c0_i32 = arith.constant 0 : i32
    %c0_i32_0 = arith.constant 0 : i32
    %c0_i32_1 = arith.constant 0 : i32
    return %c0_i32, %c0_i32_0 : i32, i32
  }
  func.func @transform_11(%arg0: i32) -> (i32, i32) {
    %c0_i32 = arith.constant 0 : i32
    %c0_i32_0 = arith.constant 0 : i32
    return %c0_i32, %arg0 : i32, i32
  }
}

</mosaic_0001>

<llo_original>
// kernel: avrg_strategy_net_forward.1
$region0: #{avrg_strategy_net_forward.1}
  #allocation0 [shape = 'u32[]', space=smem, size = 0x4, offset = 0x4, fixed_abs, tag = 'smem constant byte address 0x4 - core index']
  #allocation1 [shape = 'u32[144,128]{1,0:T(1,128)}', space=vmem, size = 0x12000, scoped, tag = 'internal scratch']
  %s0 = inlined_call_operand.vmem [shape: f32[128,24], index: 0, kind: input, shape index: {}]
  %s1 = inlined_call_operand.vmem [shape: s32[128,1], index: 1, kind: input, shape index: {}]
  %s2 = inlined_call_operand.vmem [shape: bf16[24,128], index: 2, kind: input, shape index: {}]
  %s3 = inlined_call_operand.vmem [shape: bf16[16,128], index: 3, kind: input, shape index: {}]
  %s4 = inlined_call_operand.vmem [shape: f32[1,128], index: 4, kind: input, shape index: {}]
  %s5 = inlined_call_operand.vmem [shape: bf16[128,128], index: 5, kind: input, shape index: {}]
  %s6 = inlined_call_operand.vmem [shape: f32[1,128], index: 6, kind: input, shape index: {}]
  %s7 = inlined_call_operand.vmem [shape: bf16[128,128], index: 7, kind: input, shape index: {}]
  %s8 = inlined_call_operand.vmem [shape: f32[1,128], index: 8, kind: input, shape index: {}]
  %s9 = inlined_call_operand.vmem [shape: bf16[128,128], index: 9, kind: input, shape index: {}]
  %s10 = inlined_call_operand.vmem [shape: f32[1,128], index: 10, kind: input, shape index: {}]
  %s11 = inlined_call_operand.vmem [shape: f32[8,128], index: 11, kind: output, shape index: {}]
  %s12 = sld [smem:[#allocation0]]
  $region54: #{avrg_strategy_net_forward.1} parent=0
    _
  %s14 = ssub.s32 1, %s12
  %s15 = scalar_select 0, %s14, %s12
  // Predicated region
  $region2: #{avrg_strategy_net_forward.1} parent=0 // pred_check
    _
  $region3: #{avrg_strategy_net_forward.1} parent=0 // pred_check_branch
    %17 = sbr.rel (0) target = $region5
  $region4: #{avrg_strategy_net_forward.1} parent=0 // pred_region
    _
  $region5: #{avrg_strategy_net_forward.1} parent=0 // pred_fallthru
    _
  // Predicated region
  $region6: #{avrg_strategy_net_forward.1} parent=0 // pred_check
    _
  $region7: #{avrg_strategy_net_forward.1} parent=0 // pred_check_branch
    %19 = sbr.rel (0) target = $region9
  $region8: #{avrg_strategy_net_forward.1} parent=0 // pred_region
    _
  $region9: #{avrg_strategy_net_forward.1} parent=0 // pred_fallthru
    _
  // Predicated region
  $region10: #{avrg_strategy_net_forward.1} parent=0 // pred_check
    _
  $region11: #{avrg_strategy_net_forward.1} parent=0 // pred_check_branch
    %21 = sbr.rel (0) target = $region13
  $region12: #{avrg_strategy_net_forward.1} parent=0 // pred_region
    _
  $region13: #{avrg_strategy_net_forward.1} parent=0 // pred_fallthru
    _
  // Predicated region
  $region14: #{avrg_strategy_net_forward.1} parent=0 // pred_check
    _
  $region15: #{avrg_strategy_net_forward.1} parent=0 // pred_check_branch
    %23 = sbr.rel (0) target = $region17
  $region16: #{avrg_strategy_net_forward.1} parent=0 // pred_region
    _
  $region17: #{avrg_strategy_net_forward.1} parent=0 // pred_fallthru
    _
  // Predicated region
  $region18: #{avrg_strategy_net_forward.1} parent=0 // pred_check
    _
  $region19: #{avrg_strategy_net_forward.1} parent=0 // pred_check_branch
    %25 = sbr.rel (0) target = $region21
  $region20: #{avrg_strategy_net_forward.1} parent=0 // pred_region
    _
  $region21: #{avrg_strategy_net_forward.1} parent=0 // pred_fallthru
    _
  // Predicated region
  $region22: #{avrg_strategy_net_forward.1} parent=0 // pred_check
    _
  $region23: #{avrg_strategy_net_forward.1} parent=0 // pred_check_branch
    %27 = sbr.rel (0) target = $region25
  $region24: #{avrg_strategy_net_forward.1} parent=0 // pred_region
    _
  $region25: #{avrg_strategy_net_forward.1} parent=0 // pred_fallthru
    _
  // Predicated region
  $region26: #{avrg_strategy_net_forward.1} parent=0 // pred_check
    _
  $region27: #{avrg_strategy_net_forward.1} parent=0 // pred_check_branch
    %29 = sbr.rel (0) target = $region29
  $region28: #{avrg_strategy_net_forward.1} parent=0 // pred_region
    _
  $region29: #{avrg_strategy_net_forward.1} parent=0 // pred_fallthru
    _
  // Predicated region
  $region30: #{avrg_strategy_net_forward.1} parent=0 // pred_check
    _
  $region31: #{avrg_strategy_net_forward.1} parent=0 // pred_check_branch
    %31 = sbr.rel (0) target = $region33
  $region32: #{avrg_strategy_net_forward.1} parent=0 // pred_region
    _
  $region33: #{avrg_strategy_net_forward.1} parent=0 // pred_fallthru
    _
  // Predicated region
  $region34: #{avrg_strategy_net_forward.1} parent=0 // pred_check
    _
  $region35: #{avrg_strategy_net_forward.1} parent=0 // pred_check_branch
    %33 = sbr.rel (0) target = $region37
  $region36: #{avrg_strategy_net_forward.1} parent=0 // pred_region
    _
  $region37: #{avrg_strategy_net_forward.1} parent=0 // pred_fallthru
    _
  // Predicated region
  $region38: #{avrg_strategy_net_forward.1} parent=0 // pred_check
    _
  $region39: #{avrg_strategy_net_forward.1} parent=0 // pred_check_branch
    %35 = sbr.rel (0) target = $region41
  $region40: #{avrg_strategy_net_forward.1} parent=0 // pred_region
    _
  $region41: #{avrg_strategy_net_forward.1} parent=0 // pred_fallthru
    _
  // Predicated region
  $region42: #{avrg_strategy_net_forward.1} parent=0 // pred_check
    _
  $region43: #{avrg_strategy_net_forward.1} parent=0 // pred_check_branch
    %37 = sbr.rel (0) target = $region45
  $region44: #{avrg_strategy_net_forward.1} parent=0 // pred_region
    _
  $region45: #{avrg_strategy_net_forward.1} parent=0 // pred_fallthru
    _
  %v39 = vld [vmem:[%s0] sm:$0xff]
  %v40 = vld [vmem:[%s0 + $0x8] sm:$0xff]
  %v41 = vld [vmem:[%s0 + $0x10] sm:$0xff]
  %v42 = vld [vmem:[%s0 + $0x18] sm:$0xff]
  %v43 = vld [vmem:[%s0 + $0x20] sm:$0xff]
  %v44 = vld [vmem:[%s0 + $0x28] sm:$0xff]
  %v45 = vld [vmem:[%s0 + $0x30] sm:$0xff]
  %v46 = vld [vmem:[%s0 + $0x38] sm:$0xff]
  %v47 = vld [vmem:[%s0 + $0x40] sm:$0xff]
  %v48 = vld [vmem:[%s0 + $0x48] sm:$0xff]
  %v49 = vld [vmem:[%s0 + $0x50] sm:$0xff]
  %v50 = vld [vmem:[%s0 + $0x58] sm:$0xff]
  %v51 = vld [vmem:[%s0 + $0x60] sm:$0xff]
  %v52 = vld [vmem:[%s0 + $0x68] sm:$0xff]
  %v53 = vld [vmem:[%s0 + $0x70] sm:$0xff]
  %v54 = vld [vmem:[%s0 + $0x78] sm:$0xff]
  %v55 = vpack.c.bf16 %v40, %v39
  %v56 = vpack.c.bf16 %v42, %v41
  %v57 = vpack.c.bf16 %v44, %v43
  %v58 = vpack.c.bf16 %v46, %v45
  %v59 = vpack.c.bf16 %v48, %v47
  %v60 = vpack.c.bf16 %v50, %v49
  %v61 = vpack.c.bf16 %v52, %v51
  %v62 = vpack.c.bf16 %v54, %v53
  %v63 = vld [vmem:[%s1] sm:$0xff]
  %v64 = vld [vmem:[%s1 + $0x8] sm:$0xff]
  %v65 = vld [vmem:[%s1 + $0x10] sm:$0xff]
  %v66 = vld [vmem:[%s1 + $0x18] sm:$0xff]
  %v67 = vld [vmem:[%s1 + $0x20] sm:$0xff]
  %v68 = vld [vmem:[%s1 + $0x28] sm:$0xff]
  %v69 = vld [vmem:[%s1 + $0x30] sm:$0xff]
  %v70 = vld [vmem:[%s1 + $0x38] sm:$0xff]
  %v71 = vld [vmem:[%s1 + $0x40] sm:$0xff]
  %v72 = vld [vmem:[%s1 + $0x48] sm:$0xff]
  %v73 = vld [vmem:[%s1 + $0x50] sm:$0xff]
  %v74 = vld [vmem:[%s1 + $0x58] sm:$0xff]
  %v75 = vld [vmem:[%s1 + $0x60] sm:$0xff]
  %v76 = vld [vmem:[%s1 + $0x68] sm:$0xff]
  %v77 = vld [vmem:[%s1 + $0x70] sm:$0xff]
  %v78 = vld [vmem:[%s1 + $0x78] sm:$0xff]
  %v79 = vlaneseq
  %v80 = vand.u32 %v79, 127
  %81 = vset.pattern.permute.xlu0 0
  %82 = vperm.xlu0 %81, %v63
  %v83 = vpop.permute.xlu0 %82
  %84 = vset.pattern.permute.xlu0 0
  %85 = vperm.xlu0 %84, %v64
  %v86 = vpop.permute.xlu0 %85
  %87 = vset.pattern.permute.xlu0 0
  %88 = vperm.xlu0 %87, %v65
  %v89 = vpop.permute.xlu0 %88
  %90 = vset.pattern.permute.xlu0 0
  %91 = vperm.xlu0 %90, %v66
  %v92 = vpop.permute.xlu0 %91
  %93 = vset.pattern.permute.xlu0 0
  %94 = vperm.xlu0 %93, %v67
  %v95 = vpop.permute.xlu0 %94
  %96 = vset.pattern.permute.xlu0 0
  %97 = vperm.xlu0 %96, %v68
  %v98 = vpop.permute.xlu0 %97
  %99 = vset.pattern.permute.xlu0 0
  %100 = vperm.xlu0 %99, %v69
  %v101 = vpop.permute.xlu0 %100
  %102 = vset.pattern.permute.xlu0 0
  %103 = vperm.xlu0 %102, %v70
  %v104 = vpop.permute.xlu0 %103
  %105 = vset.pattern.permute.xlu0 0
  %106 = vperm.xlu0 %105, %v71
  %v107 = vpop.permute.xlu0 %106
  %108 = vset.pattern.permute.xlu0 0
  %109 = vperm.xlu0 %108, %v72
  %v110 = vpop.permute.xlu0 %109
  %111 = vset.pattern.permute.xlu0 0
  %112 = vperm.xlu0 %111, %v73
  %v113 = vpop.permute.xlu0 %112
  %114 = vset.pattern.permute.xlu0 0
  %115 = vperm.xlu0 %114, %v74
  %v116 = vpop.permute.xlu0 %115
  %117 = vset.pattern.permute.xlu0 0
  %118 = vperm.xlu0 %117, %v75
  %v119 = vpop.permute.xlu0 %118
  %120 = vset.pattern.permute.xlu0 0
  %121 = vperm.xlu0 %120, %v76
  %v122 = vpop.permute.xlu0 %121
  %123 = vset.pattern.permute.xlu0 0
  %124 = vperm.xlu0 %123, %v77
  %v125 = vpop.permute.xlu0 %124
  %126 = vset.pattern.permute.xlu0 0
  %127 = vperm.xlu0 %126, %v78
  %v128 = vpop.permute.xlu0 %127
  %vm129 = vcmp.eq.s32.totalorder %v80, %v83
  %vm130 = vcmp.eq.s32.totalorder %v80, %v86
  %vm131 = vcmp.eq.s32.totalorder %v80, %v89
  %vm132 = vcmp.eq.s32.totalorder %v80, %v92
  %vm133 = vcmp.eq.s32.totalorder %v80, %v95
  %vm134 = vcmp.eq.s32.totalorder %v80, %v98
  %vm135 = vcmp.eq.s32.totalorder %v80, %v101
  %vm136 = vcmp.eq.s32.totalorder %v80, %v104
  %vm137 = vcmp.eq.s32.totalorder %v80, %v107
  %vm138 = vcmp.eq.s32.totalorder %v80, %v110
  %vm139 = vcmp.eq.s32.totalorder %v80, %v113
  %vm140 = vcmp.eq.s32.totalorder %v80, %v116
  %vm141 = vcmp.eq.s32.totalorder %v80, %v119
  %vm142 = vcmp.eq.s32.totalorder %v80, %v122
  %vm143 = vcmp.eq.s32.totalorder %v80, %v125
  %vm144 = vcmp.eq.s32.totalorder %v80, %v128
  %v145 = vsel %vm129, 1, 0
  %v146 = vsel %vm130, 1, 0
  %v147 = vsel %vm131, 1, 0
  %v148 = vsel %vm132, 1, 0
  %v149 = vsel %vm133, 1, 0
  %v150 = vsel %vm134, 1, 0
  %v151 = vsel %vm135, 1, 0
  %v152 = vsel %vm136, 1, 0
  %v153 = vsel %vm137, 1, 0
  %v154 = vsel %vm138, 1, 0
  %v155 = vsel %vm139, 1, 0
  %v156 = vsel %vm140, 1, 0
  %v157 = vsel %vm141, 1, 0
  %v158 = vsel %vm142, 1, 0
  %v159 = vsel %vm143, 1, 0
  %v160 = vsel %vm144, 1, 0
  %v161 = vcvt.s32.f32 %v145
  %v162 = vcvt.s32.f32 %v146
  %v163 = vcvt.s32.f32 %v147
  %v164 = vcvt.s32.f32 %v148
  %v165 = vcvt.s32.f32 %v149
  %v166 = vcvt.s32.f32 %v150
  %v167 = vcvt.s32.f32 %v151
  %v168 = vcvt.s32.f32 %v152
  %v169 = vcvt.s32.f32 %v153
  %v170 = vcvt.s32.f32 %v154
  %v171 = vcvt.s32.f32 %v155
  %v172 = vcvt.s32.f32 %v156
  %v173 = vcvt.s32.f32 %v157
  %v174 = vcvt.s32.f32 %v158
  %v175 = vcvt.s32.f32 %v159
  %v176 = vcvt.s32.f32 %v160
  %v177 = vpack.c.bf16 %v162, %v161
  %v178 = vpack.c.bf16 %v164, %v163
  %v179 = vpack.c.bf16 %v166, %v165
  %v180 = vpack.c.bf16 %v168, %v167
  %v181 = vpack.c.bf16 %v170, %v169
  %v182 = vpack.c.bf16 %v172, %v171
  %v183 = vpack.c.bf16 %v174, %v173
  %v184 = vpack.c.bf16 %v176, %v175
  %v185 = vld [vmem:[%s2] sm:$0xf]
  %v186 = vld [vmem:[%s2 + $0x4] sm:$0xf]
  %v187 = vld [vmem:[%s2 + $0x8] sm:$0xf]
  %v188 = vld [vmem:[%s3] sm:$0xf]
  %v189 = vld [vmem:[%s3 + $0x4] sm:$0xf]
  %v192 = vunpack.c.l.b16 %v188
  %v193 = vunpack.c.l.b16 %v189
  %v194 = vpack.c.b16 %v193, %v192
  %vm196 = vcmask 130048
  %v198 = vsel %vm196, %v177, 0
  %v201 = vsel %vm196, %v178, 0
  %v204 = vsel %vm196, %v179, 0
  %v207 = vsel %vm196, %v180, 0
  %v210 = vsel %vm196, %v181, 0
  %v213 = vsel %vm196, %v182, 0
  %v216 = vsel %vm196, %v183, 0
  %v219 = vsel %vm196, %v184, 0
  %221 = vmatprep.subr.bf16.mxu0 0
  %222 = vmatpush1.bf16.msra.mxu0 %v194
  %223 = vmatprep.subr.bf16.mxu0 0
  %224 = vmatpush1.bf16.msra.mxu0 0
  %225 = vmatprep.subr.bf16.mxu0 0
  %226 = vmatpush1.bf16.msra.mxu0 0
  %227 = vmatprep.subr.bf16.mxu0 0
  %228 = vmatpush1.bf16.msra.mxu0 0
  %229 = vmatprep.subr.bf16.mxu0 0
  %230 = vmatpush1.bf16.msra.mxu0 0
  %231 = vmatprep.subr.bf16.mxu0 0
  %232 = vmatpush1.bf16.msra.mxu0 0
  %233 = vmatprep.subr.bf16.mxu0 0
  %234 = vmatpush1.bf16.msra.mxu0 0
  %235 = vmatprep.subr.bf16.mxu0 0
  %236 = vmatpush1.bf16.msra.mxu0 0
  %237 = vmatprep.subr.bf16.mxu0 0
  %238 = vmatpush1.bf16.msra.mxu0 0
  %239 = vmatprep.subr.bf16.mxu0 0
  %240 = vmatpush1.bf16.msra.mxu0 0
  %241 = vmatprep.subr.bf16.mxu0 0
  %242 = vmatpush1.bf16.msra.mxu0 0
  %243 = vmatprep.subr.bf16.mxu0 0
  %244 = vmatpush1.bf16.msra.mxu0 0
  %245 = vmatprep.subr.bf16.mxu0 0
  %246 = vmatpush1.bf16.msra.mxu0 0
  %247 = vmatprep.subr.bf16.mxu0 0
  %248 = vmatpush1.bf16.msra.mxu0 0
  %249 = vmatprep.subr.bf16.mxu0 0
  %250 = vmatpush1.bf16.msra.mxu0 0
  %251 = vmatprep.subr.bf16.mxu0 0
  %252 = vmatpush1.bf16.msra.mxu0 0
  %253 = vmatprep.mubr.bf16.mxu0 0
  %254 = vmatmul.mubr.bf16.gmra.mrb[0].mxu0 %v198
  %v255 = vpop.f32.mrb[0].mxu0
  %v256 = vadd.f32 0.0, %v255
  %v257 = vpop.f32.mrb[0].mxu0
  %v258 = vpop.f32.mrb[0].mxu0
  %v259 = vadd.f32 0.0, %v258
  %v260 = vpop.f32.mrb[0].mxu0
  %261 = vmatprep.mubr.bf16.mxu0 0
  %262 = vmatmul.mubr.bf16.gmra.mrb[0].mxu0 %v201
  %v263 = vpop.f32.mrb[0].mxu0
  %v264 = vadd.f32 0.0, %v263
  %v265 = vpop.f32.mrb[0].mxu0
  %v266 = vpop.f32.mrb[0].mxu0
  %v267 = vadd.f32 0.0, %v266
  %v268 = vpop.f32.mrb[0].mxu0
  %269 = vmatprep.mubr.bf16.mxu0 0
  %270 = vmatmul.mubr.bf16.gmra.mrb[0].mxu0 %v204
  %v271 = vpop.f32.mrb[0].mxu0
  %v272 = vadd.f32 0.0, %v271
  %v273 = vpop.f32.mrb[0].mxu0
  %v274 = vpop.f32.mrb[0].mxu0
  %v275 = vadd.f32 0.0, %v274
  %v276 = vpop.f32.mrb[0].mxu0
  %277 = vmatprep.mubr.bf16.mxu0 0
  %278 = vmatmul.mubr.bf16.gmra.mrb[0].mxu0 %v207
  %v279 = vpop.f32.mrb[0].mxu0
  %v280 = vadd.f32 0.0, %v279
  %v281 = vpop.f32.mrb[0].mxu0
  %v282 = vpop.f32.mrb[0].mxu0
  %v283 = vadd.f32 0.0, %v282
  %v284 = vpop.f32.mrb[0].mxu0
  %285 = vmatprep.mubr.bf16.mxu0 0
  %286 = vmatmul.mubr.bf16.gmra.mrb[0].mxu0 %v210
  %v287 = vpop.f32.mrb[0].mxu0
  %v288 = vadd.f32 0.0, %v287
  %v289 = vpop.f32.mrb[0].mxu0
  %v290 = vpop.f32.mrb[0].mxu0
  %v291 = vadd.f32 0.0, %v290
  %v292 = vpop.f32.mrb[0].mxu0
  %293 = vmatprep.mubr.bf16.mxu0 0
  %294 = vmatmul.mubr.bf16.gmra.mrb[0].mxu0 %v213
  %v295 = vpop.f32.mrb[0].mxu0
  %v296 = vadd.f32 0.0, %v295
  %v297 = vpop.f32.mrb[0].mxu0
  %v298 = vpop.f32.mrb[0].mxu0
  %v299 = vadd.f32 0.0, %v298
  %v300 = vpop.f32.mrb[0].mxu0
  %301 = vmatprep.mubr.bf16.mxu0 0
  %302 = vmatmul.mubr.bf16.gmra.mrb[0].mxu0 %v216
  %v303 = vpop.f32.mrb[0].mxu0
  %v304 = vadd.f32 0.0, %v303
  %v305 = vpop.f32.mrb[0].mxu0
  %v306 = vpop.f32.mrb[0].mxu0
  %v307 = vadd.f32 0.0, %v306
  %v308 = vpop.f32.mrb[0].mxu0
  %309 = vmatprep.mubr.bf16.mxu0 0
  %310 = vmatmul.mubr.bf16.gmra.mrb[0].mxu0 %v219
  %v311 = vpop.f32.mrb[0].mxu0
  %v312 = vadd.f32 0.0, %v311
  %v313 = vpop.f32.mrb[0].mxu0
  %v314 = vpop.f32.mrb[0].mxu0
  %v315 = vadd.f32 0.0, %v314
  %v316 = vpop.f32.mrb[0].mxu0
  %317 = vdwg.mxu0
  %v321 = vunpack.c.l.b16 %v185
  %v322 = vunpack.c.l.b16 %v186
  %v323 = vunpack.c.l.b16 %v187
  %v324 = vpack.c.b16 %v322, %v321
  %v325 = vpack.c.b16 %v323, %v323
  %vm327 = vcmask 195584
  %v329 = vsel %vm327, %v55, 0
  %v332 = vsel %vm327, %v56, 0
  %v335 = vsel %vm327, %v57, 0
  %v338 = vsel %vm327, %v58, 0
  %v341 = vsel %vm327, %v59, 0
  %v344 = vsel %vm327, %v60, 0
  %v347 = vsel %vm327, %v61, 0
  %v350 = vsel %vm327, %v62, 0
  %vm352 = vcmask 1043456
  %v354 = vsel %vm352, %v325, 0
  %356 = vmatprep.subr.bf16.mxu0 0
  %357 = vmatpush1.bf16.msra.mxu0 %v324
  %358 = vmatprep.subr.bf16.mxu0 0
  %359 = vmatpush1.bf16.msra.mxu0 %v354
  %360 = vmatprep.subr.bf16.mxu0 0
  %361 = vmatpush1.bf16.msra.mxu0 0
  %362 = vmatprep.subr.bf16.mxu0 0
  %363 = vmatpush1.bf16.msra.mxu0 0
  %364 = vmatprep.subr.bf16.mxu0 0
  %365 = vmatpush1.bf16.msra.mxu0 0
  %366 = vmatprep.subr.bf16.mxu0 0
  %367 = vmatpush1.bf16.msra.mxu0 0
  %368 = vmatprep.subr.bf16.mxu0 0
  %369 = vmatpush1.bf16.msra.mxu0 0
  %370 = vmatprep.subr.bf16.mxu0 0
  %371 = vmatpush1.bf16.msra.mxu0 0
  %372 = vmatprep.subr.bf16.mxu0 0
  %373 = vmatpush1.bf16.msra.mxu0 0
  %374 = vmatprep.subr.bf16.mxu0 0
  %375 = vmatpush1.bf16.msra.mxu0 0
  %376 = vmatprep.subr.bf16.mxu0 0
  %377 = vmatpush1.bf16.msra.mxu0 0
  %378 = vmatprep.subr.bf16.mxu0 0
  %379 = vmatpush1.bf16.msra.mxu0 0
  %380 = vmatprep.subr.bf16.mxu0 0
  %381 = vmatpush1.bf16.msra.mxu0 0
  %382 = vmatprep.subr.bf16.mxu0 0
  %383 = vmatpush1.bf16.msra.mxu0 0
  %384 = vmatprep.subr.bf16.mxu0 0
  %385 = vmatpush1.bf16.msra.mxu0 0
  %386 = vmatprep.subr.bf16.mxu0 0
  %387 = vmatpush1.bf16.msra.mxu0 0
  %388 = vmatprep.mubr.bf16.mxu0 0
  %389 = vmatmul.mubr.bf16.gmra.mrb[0].mxu0 %v329
  %v390 = vpop.f32.mrb[0].mxu0
  %v391 = vadd.f32 %v256, %v390
  %v392 = vpop.f32.mrb[0].mxu0
  %v393 = vpop.f32.mrb[0].mxu0
  %v394 = vadd.f32 %v259, %v393
  %v395 = vpop.f32.mrb[0].mxu0
  %396 = vmatprep.mubr.bf16.mxu0 0
  %397 = vmatmul.mubr.bf16.gmra.mrb[0].mxu0 %v332
  %v398 = vpop.f32.mrb[0].mxu0
  %v399 = vadd.f32 %v264, %v398
  %v400 = vpop.f32.mrb[0].mxu0
  %v401 = vpop.f32.mrb[0].mxu0
  %v402 = vadd.f32 %v267, %v401
  %v403 = vpop.f32.mrb[0].mxu0
  %404 = vmatprep.mubr.bf16.mxu0 0
  %405 = vmatmul.mubr.bf16.gmra.mrb[0].mxu0 %v335
  %v406 = vpop.f32.mrb[0].mxu0
  %v407 = vadd.f32 %v272, %v406
  %v408 = vpop.f32.mrb[0].mxu0
  %v409 = vpop.f32.mrb[0].mxu0
  %v410 = vadd.f32 %v275, %v409
  %v411 = vpop.f32.mrb[0].mxu0
  %412 = vmatprep.mubr.bf16.mxu0 0
  %413 = vmatmul.mubr.bf16.gmra.mrb[0].mxu0 %v338
  %v414 = vpop.f32.mrb[0].mxu0
  %v415 = vadd.f32 %v280, %v414
  %v416 = vpop.f32.mrb[0].mxu0
  %v417 = vpop.f32.mrb[0].mxu0
  %v418 = vadd.f32 %v283, %v417
  %v419 = vpop.f32.mrb[0].mxu0
  %420 = vmatprep.mubr.bf16.mxu0 0
  %421 = vmatmul.mubr.bf16.gmra.mrb[0].mxu0 %v341
  %v422 = vpop.f32.mrb[0].mxu0
  %v423 = vadd.f32 %v288, %v422
  %v424 = vpop.f32.mrb[0].mxu0
  %v425 = vpop.f32.mrb[0].mxu0
  %v426 = vadd.f32 %v291, %v425
  %v427 = vpop.f32.mrb[0].mxu0
  %428 = vmatprep.mubr.bf16.mxu0 0
  %429 = vmatmul.mubr.bf16.gmra.mrb[0].mxu0 %v344
  %v430 = vpop.f32.mrb[0].mxu0
  %v431 = vadd.f32 %v296, %v430
  %v432 = vpop.f32.mrb[0].mxu0
  %v433 = vpop.f32.mrb[0].mxu0
  %v434 = vadd.f32 %v299, %v433
  %v435 = vpop.f32.mrb[0].mxu0
  %436 = vmatprep.mubr.bf16.mxu0 0
  %437 = vmatmul.mubr.bf16.gmra.mrb[0].mxu0 %v347
  %v438 = vpop.f32.mrb[0].mxu0
  %v439 = vadd.f32 %v304, %v438
  %v440 = vpop.f32.mrb[0].mxu0
  %v441 = vpop.f32.mrb[0].mxu0
  %v442 = vadd.f32 %v307, %v441
  %v443 = vpop.f32.mrb[0].mxu0
  %444 = vmatprep.mubr.bf16.mxu0 0
  %445 = vmatmul.mubr.bf16.gmra.mrb[0].mxu0 %v350
  %v446 = vpop.f32.mrb[0].mxu0
  %v447 = vadd.f32 %v312, %v446
  %v448 = vpop.f32.mrb[0].mxu0
  %v449 = vpop.f32.mrb[0].mxu0
  %v450 = vadd.f32 %v315, %v449
  %v451 = vpop.f32.mrb[0].mxu0
  %452 = vdwg.mxu0
  %v453 = vld [vmem:[%s4] sm:$0x1]
  %v455 = vlaneseq
  %v456 = vshrl.u32 %v455, 7
  %v457 = vsub.s32 0, %v456
  %v458 = vrot.slane %v453, %v457
  %v460 = vadd.f32 %v391, %v458
  %v461 = vadd.f32 %v394, %v458
  %v462 = vadd.f32 %v399, %v458
  %v463 = vadd.f32 %v402, %v458
  %v464 = vadd.f32 %v407, %v458
  %v465 = vadd.f32 %v410, %v458
  %v466 = vadd.f32 %v415, %v458
  %v467 = vadd.f32 %v418, %v458
  %v468 = vadd.f32 %v423, %v458
  %v469 = vadd.f32 %v426, %v458
  %v470 = vadd.f32 %v431, %v458
  %v471 = vadd.f32 %v434, %v458
  %v472 = vadd.f32 %v439, %v458
  %v473 = vadd.f32 %v442, %v458
  %v474 = vadd.f32 %v447, %v458
  %v475 = vadd.f32 %v450, %v458
  %v476 = vmax.f32 %v460, 0.0
  %v477 = vmax.f32 %v461, 0.0
  %v478 = vmax.f32 %v462, 0.0
  %v479 = vmax.f32 %v463, 0.0
  %v480 = vmax.f32 %v464, 0.0
  %v481 = vmax.f32 %v465, 0.0
  %v482 = vmax.f32 %v466, 0.0
  %v483 = vmax.f32 %v467, 0.0
  %v484 = vmax.f32 %v468, 0.0
  %v485 = vmax.f32 %v469, 0.0
  %v486 = vmax.f32 %v470, 0.0
  %v487 = vmax.f32 %v471, 0.0
  %v488 = vmax.f32 %v472, 0.0
  %v489 = vmax.f32 %v473, 0.0
  %v490 = vmax.f32 %v474, 0.0
  %v491 = vmax.f32 %v475, 0.0
  %v492 = vpack.c.bf16 %v477, %v476
  %v493 = vpack.c.bf16 %v479, %v478
  %v494 = vpack.c.bf16 %v481, %v480
  %v495 = vpack.c.bf16 %v483, %v482
  %v496 = vpack.c.bf16 %v485, %v484
  %v497 = vpack.c.bf16 %v487, %v486
  %v498 = vpack.c.bf16 %v489, %v488
  %v499 = vpack.c.bf16 %v491, %v490
  %v500 = vld [vmem:[%s5] sm:$0xf]
  %v501 = vld [vmem:[%s5 + $0x4] sm:$0xf]
  %v502 = vld [vmem:[%s5 + $0x8] sm:$0xf]
  %v503 = vld [vmem:[%s5 + $0xc] sm:$0xf]
  %v504 = vld [vmem:[%s5 + $0x10] sm:$0xf]
  %v505 = vld [vmem:[%s5 + $0x14] sm:$0xf]
  %v506 = vld [vmem:[%s5 + $0x18] sm:$0xf]
  %v507 = vld [vmem:[%s5 + $0x1c] sm:$0xf]
  %v508 = vld [vmem:[%s5 + $0x20] sm:$0xf]
  %v509 = vld [vmem:[%s5 + $0x24] sm:$0xf]
  %v510 = vld [vmem:[%s5 + $0x28] sm:$0xf]
  %v511 = vld [vmem:[%s5 + $0x2c] sm:$0xf]
  %v512 = vld [vmem:[%s5 + $0x30] sm:$0xf]
  %v513 = vld [vmem:[%s5 + $0x34] sm:$0xf]
  %v514 = vld [vmem:[%s5 + $0x38] sm:$0xf]
  %v515 = vld [vmem:[%s5 + $0x3c] sm:$0xf]
  %v516 = vld [vmem:[%s6] sm:$0x1]
  %v518 = vlaneseq
  %v519 = vshrl.u32 %v518, 7
  %v520 = vsub.s32 0, %v519
  %v521 = vrot.slane %v516, %v520
  %v539 = vunpack.c.l.b16 %v500
  %v540 = vunpack.c.l.b16 %v501
  %v541 = vunpack.c.l.b16 %v502
  %v542 = vunpack.c.l.b16 %v503
  %v543 = vunpack.c.l.b16 %v504
  %v544 = vunpack.c.l.b16 %v505
  %v545 = vunpack.c.l.b16 %v506
  %v546 = vunpack.c.l.b16 %v507
  %v547 = vunpack.c.l.b16 %v508
  %v548 = vunpack.c.l.b16 %v509
  %v549 = vunpack.c.l.b16 %v510
  %v550 = vunpack.c.l.b16 %v511
  %v551 = vunpack.c.l.b16 %v512
  %v552 = vunpack.c.l.b16 %v513
  %v553 = vunpack.c.l.b16 %v514
  %v554 = vunpack.c.l.b16 %v515
  %v555 = vpack.c.b16 %v540, %v539
  %v556 = vpack.c.b16 %v542, %v541
  %v557 = vpack.c.b16 %v544, %v543
  %v558 = vpack.c.b16 %v546, %v545
  %v559 = vpack.c.b16 %v548, %v547
  %v560 = vpack.c.b16 %v550, %v549
  %v561 = vpack.c.b16 %v552, %v551
  %v562 = vpack.c.b16 %v554, %v553
  %571 = vmatprep.subr.bf16.mxu0 0
  %572 = vmatpush1.bf16.msra.mxu0 %v555
  %573 = vmatprep.subr.bf16.mxu0 0
  %574 = vmatpush1.bf16.msra.mxu0 %v556
  %575 = vmatprep.subr.bf16.mxu0 0
  %576 = vmatpush1.bf16.msra.mxu0 %v557
  %577 = vmatprep.subr.bf16.mxu0 0
  %578 = vmatpush1.bf16.msra.mxu0 %v558
  %579 = vmatprep.subr.bf16.mxu0 0
  %580 = vmatpush1.bf16.msra.mxu0 %v559
  %581 = vmatprep.subr.bf16.mxu0 0
  %582 = vmatpush1.bf16.msra.mxu0 %v560
  %583 = vmatprep.subr.bf16.mxu0 0
  %584 = vmatpush1.bf16.msra.mxu0 %v561
  %585 = vmatprep.subr.bf16.mxu0 0
  %586 = vmatpush1.bf16.msra.mxu0 %v562
  %587 = vmatprep.subr.bf16.mxu0 0
  %588 = vmatpush1.bf16.msra.mxu0 0
  %589 = vmatprep.subr.bf16.mxu0 0
  %590 = vmatpush1.bf16.msra.mxu0 0
  %591 = vmatprep.subr.bf16.mxu0 0
  %592 = vmatpush1.bf16.msra.mxu0 0
  %593 = vmatprep.subr.bf16.mxu0 0
  %594 = vmatpush1.bf16.msra.mxu0 0
  %595 = vmatprep.subr.bf16.mxu0 0
  %596 = vmatpush1.bf16.msra.mxu0 0
  %597 = vmatprep.subr.bf16.mxu0 0
  %598 = vmatpush1.bf16.msra.mxu0 0
  %599 = vmatprep.subr.bf16.mxu0 0
  %600 = vmatpush1.bf16.msra.mxu0 0
  %601 = vmatprep.subr.bf16.mxu0 0
  %602 = vmatpush1.bf16.msra.mxu0 0
  %603 = vmatprep.mubr.bf16.mxu0 0
  %604 = vmatmul.mubr.bf16.gmra.mrb[0].mxu0 %v492
  %v605 = vpop.f32.mrb[0].mxu0
  %v606 = vadd.f32 %v521, %v605
  %v607 = vpop.f32.mrb[0].mxu0
  %v608 = vpop.f32.mrb[0].mxu0
  %v609 = vadd.f32 %v521, %v608
  %v610 = vpop.f32.mrb[0].mxu0
  %611 = vmatprep.mubr.bf16.mxu0 0
  %612 = vmatmul.mubr.bf16.gmra.mrb[0].mxu0 %v493
  %v613 = vpop.f32.mrb[0].mxu0
  %v614 = vadd.f32 %v521, %v613
  %v615 = vpop.f32.mrb[0].mxu0
  %v616 = vpop.f32.mrb[0].mxu0
  %v617 = vadd.f32 %v521, %v616
  %v618 = vpop.f32.mrb[0].mxu0
  %619 = vmatprep.mubr.bf16.mxu0 0
  %620 = vmatmul.mubr.bf16.gmra.mrb[0].mxu0 %v494
  %v621 = vpop.f32.mrb[0].mxu0
  %v622 = vadd.f32 %v521, %v621
  %v623 = vpop.f32.mrb[0].mxu0
  %v624 = vpop.f32.mrb[0].mxu0
  %v625 = vadd.f32 %v521, %v624
  %v626 = vpop.f32.mrb[0].mxu0
  %627 = vmatprep.mubr.bf16.mxu0 0
  %628 = vmatmul.mubr.bf16.gmra.mrb[0].mxu0 %v495
  %v629 = vpop.f32.mrb[0].mxu0
  %v630 = vadd.f32 %v521, %v629
  %v631 = vpop.f32.mrb[0].mxu0
  %v632 = vpop.f32.mrb[0].mxu0
  %v633 = vadd.f32 %v521, %v632
  %v634 = vpop.f32.mrb[0].mxu0
  %635 = vmatprep.mubr.bf16.mxu0 0
  %636 = vmatmul.mubr.bf16.gmra.mrb[0].mxu0 %v496
  %v637 = vpop.f32.mrb[0].mxu0
  %v638 = vadd.f32 %v521, %v637
  %v639 = vpop.f32.mrb[0].mxu0
  %v640 = vpop.f32.mrb[0].mxu0
  %v641 = vadd.f32 %v521, %v640
  %v642 = vpop.f32.mrb[0].mxu0
  %643 = vmatprep.mubr.bf16.mxu0 0
  %644 = vmatmul.mubr.bf16.gmra.mrb[0].mxu0 %v497
  %v645 = vpop.f32.mrb[0].mxu0
  %v646 = vadd.f32 %v521, %v645
  %v647 = vpop.f32.mrb[0].mxu0
  %v648 = vpop.f32.mrb[0].mxu0
  %v649 = vadd.f32 %v521, %v648
  %v650 = vpop.f32.mrb[0].mxu0
  %651 = vmatprep.mubr.bf16.mxu0 0
  %652 = vmatmul.mubr.bf16.gmra.mrb[0].mxu0 %v498
  %v653 = vpop.f32.mrb[0].mxu0
  %v654 = vadd.f32 %v521, %v653
  %v655 = vpop.f32.mrb[0].mxu0
  %v656 = vpop.f32.mrb[0].mxu0
  %v657 = vadd.f32 %v521, %v656
  %v658 = vpop.f32.mrb[0].mxu0
  %659 = vmatprep.mubr.bf16.mxu0 0
  %660 = vmatmul.mubr.bf16.gmra.mrb[0].mxu0 %v499
  %v661 = vpop.f32.mrb[0].mxu0
  %v662 = vadd.f32 %v521, %v661
  %v663 = vpop.f32.mrb[0].mxu0
  %v664 = vpop.f32.mrb[0].mxu0
  %v665 = vadd.f32 %v521, %v664
  %v666 = vpop.f32.mrb[0].mxu0
  %667 = vdwg.mxu0
  %v668 = vmax.f32 %v606, 0.0
  %v669 = vmax.f32 %v609, 0.0
  %v670 = vmax.f32 %v614, 0.0
  %v671 = vmax.f32 %v617, 0.0
  %v672 = vmax.f32 %v622, 0.0
  %v673 = vmax.f32 %v625, 0.0
  %v674 = vmax.f32 %v630, 0.0
  %v675 = vmax.f32 %v633, 0.0
  %v676 = vmax.f32 %v638, 0.0
  %v677 = vmax.f32 %v641, 0.0
  %v678 = vmax.f32 %v646, 0.0
  %v679 = vmax.f32 %v649, 0.0
  %v680 = vmax.f32 %v654, 0.0
  %v681 = vmax.f32 %v657, 0.0
  %v682 = vmax.f32 %v662, 0.0
  %v683 = vmax.f32 %v665, 0.0
  %v684 = vpack.c.bf16 %v669, %v668
  %v685 = vpack.c.bf16 %v671, %v670
  %v686 = vpack.c.bf16 %v673, %v672
  %v687 = vpack.c.bf16 %v675, %v674
  %v688 = vpack.c.bf16 %v677, %v676
  %v689 = vpack.c.bf16 %v679, %v678
  %v690 = vpack.c.bf16 %v681, %v680
  %v691 = vpack.c.bf16 %v683, %v682
  %v692 = vld [vmem:[%s7] sm:$0xf]
  %v693 = vld [vmem:[%s7 + $0x4] sm:$0xf]
  %v694 = vld [vmem:[%s7 + $0x8] sm:$0xf]
  %v695 = vld [vmem:[%s7 + $0xc] sm:$0xf]
  %v696 = vld [vmem:[%s7 + $0x10] sm:$0xf]
  %v697 = vld [vmem:[%s7 + $0x14] sm:$0xf]
  %v698 = vld [vmem:[%s7 + $0x18] sm:$0xf]
  %v699 = vld [vmem:[%s7 + $0x1c] sm:$0xf]
  %v700 = vld [vmem:[%s7 + $0x20] sm:$0xf]
  %v701 = vld [vmem:[%s7 + $0x24] sm:$0xf]
  %v702 = vld [vmem:[%s7 + $0x28] sm:$0xf]
  %v703 = vld [vmem:[%s7 + $0x2c] sm:$0xf]
  %v704 = vld [vmem:[%s7 + $0x30] sm:$0xf]
  %v705 = vld [vmem:[%s7 + $0x34] sm:$0xf]
  %v706 = vld [vmem:[%s7 + $0x38] sm:$0xf]
  %v707 = vld [vmem:[%s7 + $0x3c] sm:$0xf]
  %v708 = vld [vmem:[%s8] sm:$0x1]
  %v710 = vlaneseq
  %v711 = vshrl.u32 %v710, 7
  %v712 = vsub.s32 0, %v711
  %v713 = vrot.slane %v708, %v712
  %v731 = vunpack.c.l.b16 %v692
  %v732 = vunpack.c.l.b16 %v693
  %v733 = vunpack.c.l.b16 %v694
  %v734 = vunpack.c.l.b16 %v695
  %v735 = vunpack.c.l.b16 %v696
  %v736 = vunpack.c.l.b16 %v697
  %v737 = vunpack.c.l.b16 %v698
  %v738 = vunpack.c.l.b16 %v699
  %v739 = vunpack.c.l.b16 %v700
  %v740 = vunpack.c.l.b16 %v701
  %v741 = vunpack.c.l.b16 %v702
  %v742 = vunpack.c.l.b16 %v703
  %v743 = vunpack.c.l.b16 %v704
  %v744 = vunpack.c.l.b16 %v705
  %v745 = vunpack.c.l.b16 %v706
  %v746 = vunpack.c.l.b16 %v707
  %v747 = vpack.c.b16 %v732, %v731
  %v748 = vpack.c.b16 %v734, %v733
  %v749 = vpack.c.b16 %v736, %v735
  %v750 = vpack.c.b16 %v738, %v737
  %v751 = vpack.c.b16 %v740, %v739
  %v752 = vpack.c.b16 %v742, %v741
  %v753 = vpack.c.b16 %v744, %v743
  %v754 = vpack.c.b16 %v746, %v745
  %763 = vmatprep.subr.bf16.mxu0 0
  %764 = vmatpush1.bf16.msra.mxu0 %v747
  %765 = vmatprep.subr.bf16.mxu0 0
  %766 = vmatpush1.bf16.msra.mxu0 %v748
  %767 = vmatprep.subr.bf16.mxu0 0
  %768 = vmatpush1.bf16.msra.mxu0 %v749
  %769 = vmatprep.subr.bf16.mxu0 0
  %770 = vmatpush1.bf16.msra.mxu0 %v750
  %771 = vmatprep.subr.bf16.mxu0 0
  %772 = vmatpush1.bf16.msra.mxu0 %v751
  %773 = vmatprep.subr.bf16.mxu0 0
  %774 = vmatpush1.bf16.msra.mxu0 %v752
  %775 = vmatprep.subr.bf16.mxu0 0
  %776 = vmatpush1.bf16.msra.mxu0 %v753
  %777 = vmatprep.subr.bf16.mxu0 0
  %778 = vmatpush1.bf16.msra.mxu0 %v754
  %779 = vmatprep.subr.bf16.mxu0 0
  %780 = vmatpush1.bf16.msra.mxu0 0
  %781 = vmatprep.subr.bf16.mxu0 0
  %782 = vmatpush1.bf16.msra.mxu0 0
  %783 = vmatprep.subr.bf16.mxu0 0
  %784 = vmatpush1.bf16.msra.mxu0 0
  %785 = vmatprep.subr.bf16.mxu0 0
  %786 = vmatpush1.bf16.msra.mxu0 0
  %787 = vmatprep.subr.bf16.mxu0 0
  %788 = vmatpush1.bf16.msra.mxu0 0
  %789 = vmatprep.subr.bf16.mxu0 0
  %790 = vmatpush1.bf16.msra.mxu0 0
  %791 = vmatprep.subr.bf16.mxu0 0
  %792 = vmatpush1.bf16.msra.mxu0 0
  %793 = vmatprep.subr.bf16.mxu0 0
  %794 = vmatpush1.bf16.msra.mxu0 0
  %795 = vmatprep.mubr.bf16.mxu0 0
  %796 = vmatmul.mubr.bf16.gmra.mrb[0].mxu0 %v684
  %v797 = vpop.f32.mrb[0].mxu0
  %v798 = vadd.f32 %v713, %v797
  %v799 = vpop.f32.mrb[0].mxu0
  %v800 = vpop.f32.mrb[0].mxu0
  %v801 = vadd.f32 %v713, %v800
  %v802 = vpop.f32.mrb[0].mxu0
  %803 = vmatprep.mubr.bf16.mxu0 0
  %804 = vmatmul.mubr.bf16.gmra.mrb[0].mxu0 %v685
  %v805 = vpop.f32.mrb[0].mxu0
  %v806 = vadd.f32 %v713, %v805
  %v807 = vpop.f32.mrb[0].mxu0
  %v808 = vpop.f32.mrb[0].mxu0
  %v809 = vadd.f32 %v713, %v808
  %v810 = vpop.f32.mrb[0].mxu0
  %811 = vmatprep.mubr.bf16.mxu0 0
  %812 = vmatmul.mubr.bf16.gmra.mrb[0].mxu0 %v686
  %v813 = vpop.f32.mrb[0].mxu0
  %v814 = vadd.f32 %v713, %v813
  %v815 = vpop.f32.mrb[0].mxu0
  %v816 = vpop.f32.mrb[0].mxu0
  %v817 = vadd.f32 %v713, %v816
  %v818 = vpop.f32.mrb[0].mxu0
  %819 = vmatprep.mubr.bf16.mxu0 0
  %820 = vmatmul.mubr.bf16.gmra.mrb[0].mxu0 %v687
  %v821 = vpop.f32.mrb[0].mxu0
  %v822 = vadd.f32 %v713, %v821
  %v823 = vpop.f32.mrb[0].mxu0
  %v824 = vpop.f32.mrb[0].mxu0
  %v825 = vadd.f32 %v713, %v824
  %v826 = vpop.f32.mrb[0].mxu0
  %827 = vmatprep.mubr.bf16.mxu0 0
  %828 = vmatmul.mubr.bf16.gmra.mrb[0].mxu0 %v688
  %v829 = vpop.f32.mrb[0].mxu0
  %v830 = vadd.f32 %v713, %v829
  %v831 = vpop.f32.mrb[0].mxu0
  %v832 = vpop.f32.mrb[0].mxu0
  %v833 = vadd.f32 %v713, %v832
  %v834 = vpop.f32.mrb[0].mxu0
  %835 = vmatprep.mubr.bf16.mxu0 0
  %836 = vmatmul.mubr.bf16.gmra.mrb[0].mxu0 %v689
  %v837 = vpop.f32.mrb[0].mxu0
  %v838 = vadd.f32 %v713, %v837
  %v839 = vpop.f32.mrb[0].mxu0
  %v840 = vpop.f32.mrb[0].mxu0
  %v841 = vadd.f32 %v713, %v840
  %v842 = vpop.f32.mrb[0].mxu0
  %843 = vmatprep.mubr.bf16.mxu0 0
  %844 = vmatmul.mubr.bf16.gmra.mrb[0].mxu0 %v690
  %v845 = vpop.f32.mrb[0].mxu0
  %v846 = vadd.f32 %v713, %v845
  %v847 = vpop.f32.mrb[0].mxu0
  %v848 = vpop.f32.mrb[0].mxu0
  %v849 = vadd.f32 %v713, %v848
  %v850 = vpop.f32.mrb[0].mxu0
  %851 = vmatprep.mubr.bf16.mxu0 0
  %852 = vmatmul.mubr.bf16.gmra.mrb[0].mxu0 %v691
  %v853 = vpop.f32.mrb[0].mxu0
  %v854 = vadd.f32 %v713, %v853
  %v855 = vpop.f32.mrb[0].mxu0
  %v856 = vpop.f32.mrb[0].mxu0
  %v857 = vadd.f32 %v713, %v856
  %v858 = vpop.f32.mrb[0].mxu0
  %859 = vdwg.mxu0
  %v860 = vmax.f32 %v798, 0.0
  %v861 = vmax.f32 %v801, 0.0
  %v862 = vmax.f32 %v806, 0.0
  %v863 = vmax.f32 %v809, 0.0
  %v864 = vmax.f32 %v814, 0.0
  %v865 = vmax.f32 %v817, 0.0
  %v866 = vmax.f32 %v822, 0.0
  %v867 = vmax.f32 %v825, 0.0
  %v868 = vmax.f32 %v830, 0.0
  %v869 = vmax.f32 %v833, 0.0
  %v870 = vmax.f32 %v838, 0.0
  %v871 = vmax.f32 %v841, 0.0
  %v872 = vmax.f32 %v846, 0.0
  %v873 = vmax.f32 %v849, 0.0
  %v874 = vmax.f32 %v854, 0.0
  %v875 = vmax.f32 %v857, 0.0
  %v876 = vpack.c.bf16 %v861, %v860
  %v877 = vpack.c.bf16 %v863, %v862
  %v878 = vpack.c.bf16 %v865, %v864
  %v879 = vpack.c.bf16 %v867, %v866
  %v880 = vpack.c.bf16 %v869, %v868
  %v881 = vpack.c.bf16 %v871, %v870
  %v882 = vpack.c.bf16 %v873, %v872
  %v883 = vpack.c.bf16 %v875, %v874
  %v884 = vld [vmem:[%s9] sm:$0xf]
  %v885 = vld [vmem:[%s9 + $0x4] sm:$0xf]
  %v886 = vld [vmem:[%s9 + $0x8] sm:$0xf]
  %v887 = vld [vmem:[%s9 + $0xc] sm:$0xf]
  %v888 = vld [vmem:[%s9 + $0x10] sm:$0xf]
  %v889 = vld [vmem:[%s9 + $0x14] sm:$0xf]
  %v890 = vld [vmem:[%s9 + $0x18] sm:$0xf]
  %v891 = vld [vmem:[%s9 + $0x1c] sm:$0xf]
  %v892 = vld [vmem:[%s9 + $0x20] sm:$0xf]
  %v893 = vld [vmem:[%s9 + $0x24] sm:$0xf]
  %v894 = vld [vmem:[%s9 + $0x28] sm:$0xf]
  %v895 = vld [vmem:[%s9 + $0x2c] sm:$0xf]
  %v896 = vld [vmem:[%s9 + $0x30] sm:$0xf]
  %v897 = vld [vmem:[%s9 + $0x34] sm:$0xf]
  %v898 = vld [vmem:[%s9 + $0x38] sm:$0xf]
  %v899 = vld [vmem:[%s9 + $0x3c] sm:$0xf]
  %v900 = vld [vmem:[%s10] sm:$0x1]
  %v902 = vlaneseq
  %v903 = vshrl.u32 %v902, 7
  %v904 = vsub.s32 0, %v903
  %v905 = vrot.slane %v900, %v904
  %v923 = vunpack.c.l.b16 %v884
  %v924 = vunpack.c.l.b16 %v885
  %v925 = vunpack.c.l.b16 %v886
  %v926 = vunpack.c.l.b16 %v887
  %v927 = vunpack.c.l.b16 %v888
  %v928 = vunpack.c.l.b16 %v889
  %v929 = vunpack.c.l.b16 %v890
  %v930 = vunpack.c.l.b16 %v891
  %v931 = vunpack.c.l.b16 %v892
  %v932 = vunpack.c.l.b16 %v893
  %v933 = vunpack.c.l.b16 %v894
  %v934 = vunpack.c.l.b16 %v895
  %v935 = vunpack.c.l.b16 %v896
  %v936 = vunpack.c.l.b16 %v897
  %v937 = vunpack.c.l.b16 %v898
  %v938 = vunpack.c.l.b16 %v899
  %v939 = vpack.c.b16 %v924, %v923
  %v940 = vpack.c.b16 %v926, %v925
  %v941 = vpack.c.b16 %v928, %v927
  %v942 = vpack.c.b16 %v930, %v929
  %v943 = vpack.c.b16 %v932, %v931
  %v944 = vpack.c.b16 %v934, %v933
  %v945 = vpack.c.b16 %v936, %v935
  %v946 = vpack.c.b16 %v938, %v937
  %955 = vmatprep.subr.bf16.mxu0 0
  %956 = vmatpush1.bf16.msra.mxu0 %v939
  %957 = vmatprep.subr.bf16.mxu0 0
  %958 = vmatpush1.bf16.msra.mxu0 %v940
  %959 = vmatprep.subr.bf16.mxu0 0
  %960 = vmatpush1.bf16.msra.mxu0 %v941
  %961 = vmatprep.subr.bf16.mxu0 0
  %962 = vmatpush1.bf16.msra.mxu0 %v942
  %963 = vmatprep.subr.bf16.mxu0 0
  %964 = vmatpush1.bf16.msra.mxu0 %v943
  %965 = vmatprep.subr.bf16.mxu0 0
  %966 = vmatpush1.bf16.msra.mxu0 %v944
  %967 = vmatprep.subr.bf16.mxu0 0
  %968 = vmatpush1.bf16.msra.mxu0 %v945
  %969 = vmatprep.subr.bf16.mxu0 0
  %970 = vmatpush1.bf16.msra.mxu0 %v946
  %971 = vmatprep.subr.bf16.mxu0 0
  %972 = vmatpush1.bf16.msra.mxu0 0
  %973 = vmatprep.subr.bf16.mxu0 0
  %974 = vmatpush1.bf16.msra.mxu0 0
  %975 = vmatprep.subr.bf16.mxu0 0
  %976 = vmatpush1.bf16.msra.mxu0 0
  %977 = vmatprep.subr.bf16.mxu0 0
  %978 = vmatpush1.bf16.msra.mxu0 0
  %979 = vmatprep.subr.bf16.mxu0 0
  %980 = vmatpush1.bf16.msra.mxu0 0
  %981 = vmatprep.subr.bf16.mxu0 0
  %982 = vmatpush1.bf16.msra.mxu0 0
  %983 = vmatprep.subr.bf16.mxu0 0
  %984 = vmatpush1.bf16.msra.mxu0 0
  %985 = vmatprep.subr.bf16.mxu0 0
  %986 = vmatpush1.bf16.msra.mxu0 0
  %987 = vmatprep.mubr.bf16.mxu0 0
  %988 = vmatmul.mubr.bf16.gmra.mrb[0].mxu0 %v876
  %v989 = vpop.f32.mrb[0].mxu0
  %v990 = vadd.f32 %v905, %v989
  %v991 = vpop.f32.mrb[0].mxu0
  %v992 = vpop.f32.mrb[0].mxu0
  %v993 = vadd.f32 %v905, %v992
  %v994 = vpop.f32.mrb[0].mxu0
  %995 = vmatprep.mubr.bf16.mxu0 0
  %996 = vmatmul.mubr.bf16.gmra.mrb[0].mxu0 %v877
  %v997 = vpop.f32.mrb[0].mxu0
  %v998 = vadd.f32 %v905, %v997
  %v999 = vpop.f32.mrb[0].mxu0
  %v1000 = vpop.f32.mrb[0].mxu0
  %v1001 = vadd.f32 %v905, %v1000
  %v1002 = vpop.f32.mrb[0].mxu0
  %1003 = vmatprep.mubr.bf16.mxu0 0
  %1004 = vmatmul.mubr.bf16.gmra.mrb[0].mxu0 %v878
  %v1005 = vpop.f32.mrb[0].mxu0
  %v1006 = vadd.f32 %v905, %v1005
  %v1007 = vpop.f32.mrb[0].mxu0
  %v1008 = vpop.f32.mrb[0].mxu0
  %v1009 = vadd.f32 %v905, %v1008
  %v1010 = vpop.f32.mrb[0].mxu0
  %1011 = vmatprep.mubr.bf16.mxu0 0
  %1012 = vmatmul.mubr.bf16.gmra.mrb[0].mxu0 %v879
  %v1013 = vpop.f32.mrb[0].mxu0
  %v1014 = vadd.f32 %v905, %v1013
  %v1015 = vpop.f32.mrb[0].mxu0
  %v1016 = vpop.f32.mrb[0].mxu0
  %v1017 = vadd.f32 %v905, %v1016
  %v1018 = vpop.f32.mrb[0].mxu0
  %1019 = vmatprep.mubr.bf16.mxu0 0
  %1020 = vmatmul.mubr.bf16.gmra.mrb[0].mxu0 %v880
  %v1021 = vpop.f32.mrb[0].mxu0
  %v1022 = vadd.f32 %v905, %v1021
  %v1023 = vpop.f32.mrb[0].mxu0
  %v1024 = vpop.f32.mrb[0].mxu0
  %v1025 = vadd.f32 %v905, %v1024
  %v1026 = vpop.f32.mrb[0].mxu0
  %1027 = vmatprep.mubr.bf16.mxu0 0
  %1028 = vmatmul.mubr.bf16.gmra.mrb[0].mxu0 %v881
  %v1029 = vpop.f32.mrb[0].mxu0
  %v1030 = vadd.f32 %v905, %v1029
  %v1031 = vpop.f32.mrb[0].mxu0
  %v1032 = vpop.f32.mrb[0].mxu0
  %v1033 = vadd.f32 %v905, %v1032
  %v1034 = vpop.f32.mrb[0].mxu0
  %1035 = vmatprep.mubr.bf16.mxu0 0
  %1036 = vmatmul.mubr.bf16.gmra.mrb[0].mxu0 %v882
  %v1037 = vpop.f32.mrb[0].mxu0
  %v1038 = vadd.f32 %v905, %v1037
  %v1039 = vpop.f32.mrb[0].mxu0
  %v1040 = vpop.f32.mrb[0].mxu0
  %v1041 = vadd.f32 %v905, %v1040
  %v1042 = vpop.f32.mrb[0].mxu0
  %1043 = vmatprep.mubr.bf16.mxu0 0
  %1044 = vmatmul.mubr.bf16.gmra.mrb[0].mxu0 %v883
  %v1045 = vpop.f32.mrb[0].mxu0
  %v1046 = vadd.f32 %v905, %v1045
  %v1047 = vpop.f32.mrb[0].mxu0
  %v1048 = vpop.f32.mrb[0].mxu0
  %v1049 = vadd.f32 %v905, %v1048
  %v1050 = vpop.f32.mrb[0].mxu0
  %1051 = vdwg.mxu0
  %1052 = vxpose.xlu0.b32.start [1/16] %v990, 128
  %1053 = vxpose.xlu0.b32.cont [2/16] %v993, 128
  %1054 = vxpose.xlu0.b32.cont [3/16] %v998, 128
  %1055 = vxpose.xlu0.b32.cont [4/16] %v1001, 128
  %1056 = vxpose.xlu0.b32.cont [5/16] %v1006, 128
  %1057 = vxpose.xlu0.b32.cont [6/16] %v1009, 128
  %1058 = vxpose.xlu0.b32.cont [7/16] %v1014, 128
  %1059 = vxpose.xlu0.b32.cont [8/16] %v1017, 128
  %1060 = vxpose.xlu0.b32.cont [9/16] %v1022, 128
  %1061 = vxpose.xlu0.b32.cont [10/16] %v1025, 128
  %1062 = vxpose.xlu0.b32.cont [11/16] %v1030, 128
  %1063 = vxpose.xlu0.b32.cont [12/16] %v1033, 128
  %1064 = vxpose.xlu0.b32.cont [13/16] %v1038, 128
  %1065 = vxpose.xlu0.b32.cont [14/16] %v1041, 128
  %1066 = vxpose.xlu0.b32.cont [15/16] %v1046, 128
  %1067 = vxpose.xlu0.b32.end [16/16] %v1049, 128
  %v1068 = vpop.trf.xlu0
  %v1069 = vpop.trf.xlu0
  %v1070 = vpop.trf.xlu0
  %v1071 = vpop.trf.xlu0
  %v1072 = vpop.trf.xlu0
  %v1073 = vpop.trf.xlu0
  %v1074 = vpop.trf.xlu0
  %v1075 = vpop.trf.xlu0
  %v1076 = vpop.trf.xlu0
  %v1077 = vpop.trf.xlu0
  %v1078 = vpop.trf.xlu0
  %v1079 = vpop.trf.xlu0
  %v1080 = vpop.trf.xlu0
  %v1081 = vpop.trf.xlu0
  %v1082 = vpop.trf.xlu0
  %v1083 = vpop.trf.xlu0
  %1084 = vst [vmem:[%s11] sm:$0xff] %v1068
  // Predicated region
  $region46: #{avrg_strategy_net_forward.1} parent=0 // pred_check
    _
  $region47: #{avrg_strategy_net_forward.1} parent=0 // pred_check_branch
    %1086 = sbr.rel (0) target = $region49
  $region48: #{avrg_strategy_net_forward.1} parent=0 // pred_region
    _
  $region49: #{avrg_strategy_net_forward.1} parent=0 // pred_fallthru
    _
  // Predicated region
  $region50: #{avrg_strategy_net_forward.1} parent=0 // pred_check
    _
  $region51: #{avrg_strategy_net_forward.1} parent=0 // pred_check_branch
    %1088 = sbr.rel (0) target = $region53
  $region52: #{avrg_strategy_net_forward.1} parent=0 // pred_region
    _
  $region53: #{avrg_strategy_net_forward.1} parent=0 // pred_fallthru
    _

</llo_original>
